<compile_context>
chip_gen: v7x
topology: tpu7x:2x2x1
jax: 0.10.0
libtpu: 0.0.40
codegen_flags: <defaults>
</compile_context>

<pallas_src>
import jax
import jax.numpy as jnp
from jax import lax
from jax.experimental import pallas as pl
from jax.experimental.pallas import tpu as pltpu

BN_EPS = 1e-5
_STATIC_UNROLL_MAX = 8        # chunks up to this length are fully statically unrolled


def _reorder_gate_cols(w, H):
    """PyTorch LSTM gate column order (i, f, g, o) -> grouped (i, f, o | g)."""
    i = w[..., 0 * H:1 * H]
    f = w[..., 1 * H:2 * H]
    g = w[..., 2 * H:3 * H]
    o = w[..., 3 * H:4 * H]
    return jnp.concatenate([i, f, o, g], axis=-1)


# ------------- Kernel 1: conv (im2col) + ReLU + fused input projections -------------

def conv_proj_kernel(win_ref, w3_ref, cbias_ref, wcat_ref, bcat_ref, gxf_ref, gxb_ref):
    # win: (rows_bk, 3D) bf16 im2col rows (t-major, then b)
    # w3:  (3D, D) bf16, eval-mode BatchNorm scale folded in
    # cbias: (1, D) f32 conv bias
    # wcat: (D, 8H) bf16 = [W_ih_fwd | W_ih_bwd], gate cols reordered (i,f,o,g)
    # bcat: (1, 8H) f32 = [b_fwd | b_bwd] (b_ih + b_hh folded)
    feats = jnp.dot(win_ref[...], w3_ref[...], preferred_element_type=jnp.float32)
    feats = jnp.maximum(feats + cbias_ref[...], 0.0)                 # conv bias + ReLU
    gx = jnp.dot(feats.astype(jnp.bfloat16), wcat_ref[...],
                 preferred_element_type=jnp.float32) + bcat_ref[...]
    h4 = gxf_ref.shape[1]
    gxf_ref[...] = gx[:, :h4].astype(gxf_ref.dtype)
    gxb_ref[...] = gx[:, h4:].astype(gxb_ref.dtype)


def _pick_rows_bk(total_rows):
    for cand in (512, 256, 128, 64, 32, 16, 8):
        if cand <= total_rows and total_rows % cand == 0:
            return cand
    return total_rows


def precompute_input_gates(x, conv_w, conv_b, params, rows_bk=None):
    B, T, D = x.shape
    H4 = params['wih_f'].shape[1]
    H = H4 // 4
    rows = T * B
    if rows_bk is None:
        rows_bk = _pick_rows_bk(rows)
    assert rows % rows_bk == 0
    assert rows_bk % 8 == 0 or rows_bk == rows
    grid = rows // rows_bk

    # One-time host-side weight transforms.
    bn_scale = 1.0 / jnp.sqrt(1.0 + BN_EPS)          # eval-mode BatchNorm2d(1), identity stats
    w3 = (conv_w * bn_scale).reshape(3 * D, D).astype(jnp.bfloat16)
    wcat = jnp.concatenate([_reorder_gate_cols(params['wih_f'], H),
                            _reorder_gate_cols(params['wih_b'], H)],
                           axis=1).astype(jnp.bfloat16)              # (D, 8H)
    bcat = jnp.concatenate([_reorder_gate_cols(params['b_f'], H),
                            _reorder_gate_cols(params['b_b'], H)], axis=1)  # (1, 8H) f32

    # Time-major im2col over the 3 conv taps, materialized in bf16 (half the bytes).
    x_t = jnp.transpose(x, (1, 0, 2))                                # (T, B, D)
    xpad = jnp.pad(x_t, ((1, 1), (0, 0), (0, 0)))                    # zero pad in time
    win = jnp.concatenate([xpad[0:T], xpad[1:T + 1], xpad[2:T + 2]], axis=-1)
    win = win.reshape(rows, 3 * D).astype(jnp.bfloat16)              # rows: t-major, then b

    flops = 2 * rows * (3 * D) * D + 2 * rows * D * (8 * H)
    bytes_accessed = (rows * 3 * D * 2 + 3 * D * D * 2 + D * 8 * H * 2
                      + (D + 8 * H) * 4 + 2 * rows * 4 * H * 2)

    gxf, gxb = pl.pallas_call(
        conv_proj_kernel,
        out_shape=(jax.ShapeDtypeStruct((rows, H4), jnp.bfloat16),
                   jax.ShapeDtypeStruct((rows, H4), jnp.bfloat16)),
        grid_spec=pltpu.PrefetchScalarGridSpec(
            num_scalar_prefetch=0,
            grid=(grid,),
            in_specs=[pl.BlockSpec((rows_bk, 3 * D), lambda i: (i, 0)),   # row-blocked
                      pl.BlockSpec((3 * D, D), lambda i: (0, 0)),         # resident
                      pl.BlockSpec((1, D), lambda i: (0, 0)),             # resident
                      pl.BlockSpec((D, 8 * H), lambda i: (0, 0)),         # resident
                      pl.BlockSpec((1, 8 * H), lambda i: (0, 0))],        # resident
            out_specs=(pl.BlockSpec((rows_bk, H4), lambda i: (i, 0)),
                       pl.BlockSpec((rows_bk, H4), lambda i: (i, 0))),
        ),
        compiler_params=pltpu.CompilerParams(
            dimension_semantics=("parallel",)),       # independent row blocks
        cost_estimate=pl.CostEstimate(flops=flops, transcendentals=0,
                                      bytes_accessed=bytes_accessed),
    )(win, w3, conv_b, wcat, bcat)
    return gxf, gxb


# --------- Kernel 2: chunked bidirectional recurrence (one fused h @ W_bd per step) ---------

def bilstm_chunk_kernel(gxf_ref, gxb_ref, wbd_ref, of_ref, ob_ref, h_sc, c_sc):
    # gxf/gxb block: (tb*B, 4H) bf16 input gates (fwd chunk c / bwd chunk C-1-c),
    #   rows t-major within the chunk then b; gate cols grouped (i, f, o | g).
    # wbd: (2H, 8H) bf16 block-diag [[Whh_f, 0], [0, Whh_b]], resident.
    # of/ob block: (B, tb, H) bf16 hidden outputs, written directly in (B, T, H) layout.
    # h_sc/c_sc: (B, 2H) f32 carried state, [:, :H] = fwd, [:, H:] = bwd.
    chunk = pl.program_id(0)
    B, tb, H = of_ref.shape
    H4 = 4 * H

    @pl.when(chunk == 0)
    def _():
        h_sc[...] = jnp.zeros_like(h_sc)
        c_sc[...] = jnp.zeros_like(c_sc)

    def step(j, carry):
        h_cat, c_cat = carry                                    # (B, 2H) f32
        dyn = not isinstance(j, int)
        rf = j * B                                              # fwd local time j
        rb = (tb - 1 - j) * B                                   # bwd reversed local time
        if dyn and B % 8 == 0:
            rf = pl.multiple_of(rf, 8)
            rb = pl.multiple_of(rb, 8)

        # One fused recurrence matmul for BOTH directions: (B,2H) @ (2H,8H).
        hw = jnp.dot(h_cat.astype(jnp.bfloat16), wbd_ref[...],
                     preferred_element_type=jnp.float32)        # (B, 8H)
        gates_f = gxf_ref[pl.ds(rf, B), :].astype(jnp.float32) + hw[:, :H4]
        gates_b = gxb_ref[pl.ds(rb, B), :].astype(jnp.float32) + hw[:, H4:]

        def lstm_dir(gates, c_prev):
            # gate layout (i, f, o | g): one 3H-wide sigmoid + one H-wide tanh
            a = jax.nn.sigmoid(gates[:, :3 * H])
            g = jnp.tanh(gates[:, 3 * H:])
            c_new = a[:, H:2 * H] * c_prev + a[:, :H] * g
            h_new = a[:, 2 * H:3 * H] * jnp.tanh(c_new)
            return h_new, c_new

        hf, cf = lstm_dir(gates_f, c_cat[:, :H])
        hb, cb = lstm_dir(gates_b, c_cat[:, H:])

        # Outputs land directly in (B, T, H) layout -> no epilogue transpose.
        of_ref[:, j, :] = hf.astype(of_ref.dtype)
        ob_ref[:, tb - 1 - j, :] = hb.astype(ob_ref.dtype)

        return (jnp.concatenate([hf, hb], axis=-1),
                jnp.concatenate([cf, cb], axis=-1))

    carry = (h_sc[...], c_sc[...])
    if tb <= _STATIC_UNROLL_MAX:
        for j in range(tb):                                     # small chunk: static unroll
            carry = step(j, carry)
    else:
        # bounded live ranges at production-sized tb (partial unroll for LLO visibility)
        carry = lax.fori_loop(0, tb, step, carry, unroll=min(tb, 8))
    h_sc[...], c_sc[...] = carry


def _pick_tb(T, B, H, vmem_budget_bytes=8 << 20):
    # resident ~= 2 dirs x 2 buffers x (tb*B,4H) bf16 gx + 2x2x(B,tb,H) bf16 out + W_bd + state
    def bytes_for(tb):
        return (2 * 2 * tb * B * 4 * H * 2 + 2 * 2 * B * tb * H * 2
                + (2 * H) * (8 * H) * 2 + 2 * B * 2 * H * 4)
    for cand in (64, 32, 16, 8):
        if cand <= T and T % cand == 0 and bytes_for(cand) <= vmem_budget_bytes:
            return cand
    return T                                   # small T: single chunk


def bilstm_recurrence(gxf, gxb, whh_f, whh_b, B, T, tb=None):
    H = whh_f.shape[0]
    H4 = 4 * H
    if tb is None:
        tb = _pick_tb(T, B, H)
    assert T % tb == 0, "T must be divisible by the timestep chunk size"
    assert tb % 8 == 0 or tb == T, "chunk length must be sublane-aligned (or == T)"
    C = T // tb

    # Block-diagonal recurrence weight: one (2H, 8H) matmul drives both directions.
    zeros = jnp.zeros((H, H4), whh_f.dtype)
    wbd = jnp.concatenate(
        [jnp.concatenate([_reorder_gate_cols(whh_f, H), zeros], axis=1),
         jnp.concatenate([zeros, _reorder_gate_cols(whh_b, H)], axis=1)],
        axis=0).astype(jnp.bfloat16)                                  # (2H, 8H)

    k2_vmem = (2 * 2 * tb * B * H4 * 2 + 2 * 2 * B * tb * H * 2
               + (2 * H) * (8 * H) * 2 + 2 * B * 2 * H * 4)
    vmem_limit = int(min(max(32 << 20, 2 * k2_vmem), 100 << 20))

    flops = 2 * T * B * (2 * H) * (8 * H)
    transcendentals = T * B * 10 * H
    bytes_accessed = 2 * T * B * H4 * 2 + 2 * B * T * H * 2 + (2 * H) * (8 * H) * 2

    out_f, out_b = pl.pallas_call(
        bilstm_chunk_kernel,
        out_shape=(jax.ShapeDtypeStruct((B, T, H), jnp.bfloat16),
                   jax.ShapeDtypeStruct((B, T, H), jnp.bfloat16)),
        grid_spec=pltpu.PrefetchScalarGridSpec(
            num_scalar_prefetch=0,
            grid=(C,),
            in_specs=[pl.BlockSpec((tb * B, H4), lambda i: (i, 0)),          # fwd gx chunks
                      pl.BlockSpec((tb * B, H4), lambda i: (C - 1 - i, 0)),  # bwd gx chunks
                      pl.BlockSpec((2 * H, 8 * H), lambda i: (0, 0))],       # resident W_bd
            out_specs=(pl.BlockSpec((B, tb, H), lambda i: (0, i, 0)),
                       pl.BlockSpec((B, tb, H), lambda i: (0, C - 1 - i, 0))),
            scratch_shapes=[pltpu.VMEM((B, 2 * H), jnp.float32),   # h state (fwd|bwd)
                            pltpu.VMEM((B, 2 * H), jnp.float32)],  # c state (fwd|bwd)
        ),
        # time-chunk axis carries state -> must stay sequential
        compiler_params=pltpu.CompilerParams(
            dimension_semantics=("arbitrary",),
            vmem_limit_bytes=vmem_limit),
        cost_estimate=pl.CostEstimate(flops=flops, transcendentals=transcendentals,
                                      bytes_accessed=bytes_accessed),
    )(gxf, gxb, wbd)
    return out_f, out_b


def bilstm_forward(x, conv_w, conv_b, params, tb=None, rows_bk=None):
    B, T, _ = x.shape
    gxf, gxb = precompute_input_gates(x, conv_w, conv_b, params, rows_bk=rows_bk)
    out_f, out_b = bilstm_recurrence(gxf, gxb, params['whh_f'], params['whh_b'],
                                     B, T, tb=tb)
    # Only remaining XLA epilogue op: fwd/bwd concat along the feature axis (bf16).
    return jnp.concatenate([out_f, out_b], axis=-1)                   # (B, T, 2H)


# ------------------------------- pure-JAX reference ----------------------------

def reference(x, conv_w, conv_b, params):
    B, T, D = x.shape
    H = params['whh_f'].shape[0]
    xn = x / jnp.sqrt(1.0 + BN_EPS)
    xpad = jnp.pad(xn, ((0, 0), (1, 1), (0, 0)))
    y = conv_b[0][None, None, :]
    for k in range(3):
        y = y + jnp.einsum('btd,dc->btc', xpad[:, k:k + T, :], conv_w[k])
    y = jnp.maximum(y, 0.0)

    def cell(wih, whh, bias):
        def f(carry, xt):
            h, c = carry
            gates = xt @ wih + h @ whh + bias
            i = jax.nn.sigmoid(gates[:, :H])
            fg = jax.nn.sigmoid(gates[:, H:2 * H])
            g = jnp.tanh(gates[:, 2 * H:3 * H])
            o = jax.nn.sigmoid(gates[:, 3 * H:4 * H])
            c = fg * c + i * g
            h = o * jnp.tanh(c)
            return (h, c), h
        return f

    xt = jnp.transpose(y, (1, 0, 2))
    init = (jnp.zeros((B, H), jnp.float32), jnp.zeros((B, H), jnp.float32))
    _, hf = jax.lax.scan(cell(params['wih_f'], params['whh_f'], params['b_f'][0]), init, xt)
    _, hb = jax.lax.scan(cell(params['wih_b'], params['whh_b'], params['b_b'][0]), init, xt[::-1])
    hb = hb[::-1]
    return jnp.transpose(jnp.concatenate([hf, hb], axis=-1), (1, 0, 2))


# -------------------------------------- main ------------------------------------

if __name__ == "__main__":
    B, T, D, H = 2, 16, 16, 32          # batch, seq, input_dim, embedding_dim
    key = jax.random.PRNGKey(0)
    keys = jax.random.split(key, 9)

    x = jax.random.normal(keys[0], (B, T, D), jnp.float32)

    conv_w = jax.random.normal(keys[1], (3, D, D), jnp.float32) * 0.1
    conv_b = jax.random.normal(keys[2], (1, D), jnp.float32) * 0.1
    params = {
        'wih_f': jax.random.normal(keys[3], (D, 4 * H), jnp.float32) * 0.1,
        'whh_f': jax.random.normal(keys[4], (H, 4 * H), jnp.float32) * 0.1,
        'b_f':   jax.random.normal(keys[5], (1, 4 * H), jnp.float32) * 0.1,
        'wih_b': jax.random.normal(keys[6], (D, 4 * H), jnp.float32) * 0.1,
        'whh_b': jax.random.normal(keys[7], (H, 4 * H), jnp.float32) * 0.1,
        'b_b':   jax.random.normal(keys[8], (1, 4 * H), jnp.float32) * 0.1,
    }

    # tb=8  -> 2 time chunks (exercises the cross-grid-step state carry);
    # rows_bk=16 -> 2 row blocks in kernel 1 (exercises pipelining / parallel axis).
    out = jax.block_until_ready(
        bilstm_forward(x, conv_w, conv_b, params, tb=8, rows_bk=16))
    ref = reference(x, conv_w, conv_b, params)

    assert out.shape == (B, T, 2 * H), out.shape
    # bf16 activations/intermediates end-to-end -> slightly looser tolerance than f32.
    assert jnp.allclose(out.astype(jnp.float32), ref, atol=3e-2, rtol=3e-2), \
        "mismatch vs JAX reference"
    print("KERNEL_OK")
</pallas_src>

<mosaic_0001>
module attributes {stable_mosaic.version = 11 : i64} {
  func.func @conv_proj_kernel(%arg0: i32, %arg1: memref<16x48xbf16, #tpu.memory_space<vmem>>, %arg2: memref<48x16xbf16, #tpu.memory_space<vmem>>, %arg3: memref<1x16xf32, #tpu.memory_space<vmem>>, %arg4: memref<16x256xbf16, #tpu.memory_space<vmem>>, %arg5: memref<1x256xf32, #tpu.memory_space<vmem>>, %arg6: memref<16x128xbf16, #tpu.memory_space<vmem>>, %arg7: memref<16x128xbf16, #tpu.memory_space<vmem>>) attributes {dimension_semantics = [#tpu.dimension_semantics<parallel>], iteration_bounds = array<i64: 2>, scalar_prefetch = 0 : i64, scratch_operands = 0 : i64, tpu.core_type = #tpu.core_type<tc>, window_params = [{transform_indices = @transform_0, window_bounds = array<i64: 16, 48>}, {pipeline_mode = #tpu.pipeline_mode<synchronous>, transform_indices = @transform_1, window_bounds = array<i64: 48, 16>}, {pipeline_mode = #tpu.pipeline_mode<synchronous>, transform_indices = @transform_2, window_bounds = array<i64: 1, 16>}, {pipeline_mode = #tpu.pipeline_mode<synchronous>, transform_indices = @transform_3, window_bounds = array<i64: 16, 256>}, {pipeline_mode = #tpu.pipeline_mode<synchronous>, transform_indices = @transform_4, window_bounds = array<i64: 1, 256>}, {transform_indices = @transform_5, window_bounds = array<i64: 16, 128>}, {transform_indices = @transform_6, window_bounds = array<i64: 16, 128>}]} {
    %c0 = arith.constant 0 : index
    %c0_0 = arith.constant 0 : index
    %0 = vector.load %arg1[%c0, %c0_0] : memref<16x48xbf16, #tpu.memory_space<vmem>>, vector<16x48xbf16>
    %c0_1 = arith.constant 0 : index
    %c0_2 = arith.constant 0 : index
    %1 = vector.load %arg2[%c0_1, %c0_2] : memref<48x16xbf16, #tpu.memory_space<vmem>>, vector<48x16xbf16>
    %cst = arith.constant dense<0.000000e+00> : vector<16x16xf32>
    %2 = tpu.matmul %0, %1, %cst {dimension_numbers = #tpu.dot_dimension_numbers<[1], [0], [0], [1], [0, 0, 1, 1], [], []>} : vector<16x48xbf16>, vector<48x16xbf16>, vector<16x16xf32> -> vector<16x16xf32>
    %c0_3 = arith.constant 0 : index
    %c0_4 = arith.constant 0 : index
    %3 = vector.load %arg3[%c0_3, %c0_4] : memref<1x16xf32, #tpu.memory_space<vmem>>, vector<1x16xf32>
    %4 = vector.broadcast %3 : vector<1x16xf32> to vector<16x16xf32>
    %5 = arith.addf %2, %4 : vector<16x16xf32>
    %cst_5 = arith.constant 0.000000e+00 : f32
    %6 = vector.broadcast %cst_5 : f32 to vector<16x16xf32>
    %7 = arith.maximumf %5, %6 : vector<16x16xf32>
    %8 = arith.truncf %7 : vector<16x16xf32> to vector<16x16xbf16>
    %c0_6 = arith.constant 0 : index
    %c0_7 = arith.constant 0 : index
    %9 = vector.load %arg4[%c0_6, %c0_7] : memref<16x256xbf16, #tpu.memory_space<vmem>>, vector<16x256xbf16>
    %cst_8 = arith.constant dense<0.000000e+00> : vector<16x256xf32>
    %10 = tpu.matmul %8, %9, %cst_8 {dimension_numbers = #tpu.dot_dimension_numbers<[1], [0], [0], [1], [0, 0, 1, 1], [], []>} : vector<16x16xbf16>, vector<16x256xbf16>, vector<16x256xf32> -> vector<16x256xf32>
    %c0_9 = arith.constant 0 : index
    %c0_10 = arith.constant 0 : index
    %11 = vector.load %arg5[%c0_9, %c0_10] : memref<1x256xf32, #tpu.memory_space<vmem>>, vector<1x256xf32>
    %12 = vector.broadcast %11 : vector<1x256xf32> to vector<16x256xf32>
    %13 = arith.addf %10, %12 : vector<16x256xf32>
    %14 = vector.extract_strided_slice %13 {offsets = [0, 0], sizes = [16, 128], strides = [1, 1]} : vector<16x256xf32> to vector<16x128xf32>
    %15 = arith.truncf %14 : vector<16x128xf32> to vector<16x128xbf16>
    %c0_11 = arith.constant 0 : index
    %c0_12 = arith.constant 0 : index
    %16 = vector.load %arg6[%c0_11, %c0_12] : memref<16x128xbf16, #tpu.memory_space<vmem>>, vector<16x128xbf16>
    tpu.vector_store %arg6[%c0_11, %c0_12], %15 {strides = array<i32>} : memref<16x128xbf16, #tpu.memory_space<vmem>>, vector<16x128xbf16>,
    %17 = vector.extract_strided_slice %13 {offsets = [0, 128], sizes = [16, 128], strides = [1, 1]} : vector<16x256xf32> to vector<16x128xf32>
    %18 = arith.truncf %17 : vector<16x128xf32> to vector<16x128xbf16>
    %c0_13 = arith.constant 0 : index
    %c0_14 = arith.constant 0 : index
    %19 = vector.load %arg7[%c0_13, %c0_14] : memref<16x128xbf16, #tpu.memory_space<vmem>>, vector<16x128xbf16>
    tpu.vector_store %arg7[%c0_13, %c0_14], %18 {strides = array<i32>} : memref<16x128xbf16, #tpu.memory_space<vmem>>, vector<16x128xbf16>,
    return
  }
  func.func @transform_0(%arg0: i32) -> (i32, i32) {
    %c0_i32 = arith.constant 0 : i32
    %c0_i32_0 = arith.constant 0 : i32
    return %arg0, %c0_i32 : i32, i32
  }
  func.func @transform_1(%arg0: i32) -> (i32, i32) {
    %c0_i32 = arith.constant 0 : i32
    %c0_i32_0 = arith.constant 0 : i32
    %c0_i32_1 = arith.constant 0 : i32
    return %c0_i32, %c0_i32_0 : i32, i32
  }
  func.func @transform_2(%arg0: i32) -> (i32, i32) {
    %c0_i32 = arith.constant 0 : i32
    %c0_i32_0 = arith.constant 0 : i32
    %c0_i32_1 = arith.constant 0 : i32
    return %c0_i32, %c0_i32_0 : i32, i32
  }
  func.func @transform_3(%arg0: i32) -> (i32, i32) {
    %c0_i32 = arith.constant 0 : i32
    %c0_i32_0 = arith.constant 0 : i32
    %c0_i32_1 = arith.constant 0 : i32
    return %c0_i32, %c0_i32_0 : i32, i32
  }
  func.func @transform_4(%arg0: i32) -> (i32, i32) {
    %c0_i32 = arith.constant 0 : i32
    %c0_i32_0 = arith.constant 0 : i32
    %c0_i32_1 = arith.constant 0 : i32
    return %c0_i32, %c0_i32_0 : i32, i32
  }
  func.func @transform_5(%arg0: i32) -> (i32, i32) {
    %c0_i32 = arith.constant 0 : i32
    %c0_i32_0 = arith.constant 0 : i32
    return %arg0, %c0_i32 : i32, i32
  }
  func.func @transform_6(%arg0: i32) -> (i32, i32) {
    %c0_i32 = arith.constant 0 : i32
    %c0_i32_0 = arith.constant 0 : i32
    return %arg0, %c0_i32 : i32, i32
  }
}

</mosaic_0001>

<llo_original>
// kernel: tpu_custom_call.1
$region0: #{tpu_custom_call.1}
  #allocation0 [shape = 'u32[]', space=smem, size = 0x4, offset = 0x4, fixed_abs, tag = 'smem constant byte address 0x4 - core index']
  #allocation1 [shape = 'u32[144,128]{1,0:T(1,128)}', space=vmem, size = 0x12000, scoped, tag = 'internal scratch']
  %s0 = inlined_call_operand.vmem [shape: bf16[32,48], index: 0, kind: input, shape index: {}]
  %s1 = inlined_call_operand.vmem [shape: bf16[48,16], index: 1, kind: input, shape index: {}]
  %s2 = inlined_call_operand.vmem [shape: f32[1,16], index: 2, kind: input, shape index: {}]
  %s3 = inlined_call_operand.vmem [shape: bf16[16,256], index: 3, kind: input, shape index: {}]
  %s4 = inlined_call_operand.vmem [shape: f32[1,256], index: 4, kind: input, shape index: {}]
  %s5 = inlined_call_operand.hbm [shape: bf16[32,128], index: 5, kind: output, shape index: {0}]
  %s6 = inlined_call_operand.hbm [shape: bf16[32,128], index: 6, kind: output, shape index: {1}]
  %7 = xla_tuple %s5, %s6
  %s8 = sld [smem:[#allocation0]]
  $region61: #{tpu_custom_call.1} parent=0
    _
  %s10 = ssub.s32 1, %s8
  %s11 = scalar_select 0, %s10, %s8
  $region1: #{tpu_custom_call.1} parent=0
    #allocation2 [shape = 'u8[8192]{0}', space=vmem, size = 0x2000, scoped, tag = 'output window, operand 0']
    #allocation3 [shape = 's32[2]{0}', space=sflag, size = 0x8, scoped, tag = 'scoped memory for tpu_custom_call.1']
    #allocation4 [shape = 'u8[8192]{0}', space=vmem, size = 0x2000, scoped, tag = 'output window, operand 1']
    #allocation5 [shape = 's32[2]{0}', space=sflag, size = 0x8, scoped, tag = 'scoped memory for tpu_custom_call.1']
    %12 = vsyncpa [#allocation3], 0
    %s13 = scalar_lea.sflag [#allocation3], 1
    %14 = vsyncpa %s13, 0
    %15 = vsyncpa [#allocation5], 0
    %s16 = scalar_lea.sflag [#allocation5], 1
    %17 = vsyncpa %s16, 0
    loop: start=0, step=1, limit=4
    $region2: #{tpu_custom_call.1} parent=1 // loop_pre_header
      _
    $region3: #{tpu_custom_call.1} parent=1 // loop_header
      %s19 = sphi 0, %s23
      %p20 = scmp.ge.s32.totalorder %s19, 4
      %s29 = sphi 0, %s31
      %s32 = sphi 0, %s29
      %s33 = sphi 0, %s32
      %s49 = sphi 0, %s33
      %s53 = sphi 0, %s53
      %s55 = sphi 0, %s53
      %s56 = sphi 0, %s55
      %s70 = sphi 0, %s56
      %s74 = sphi 0, %s74
      %s76 = sphi 0, %s74
      %s77 = sphi 0, %s76
      %s91 = sphi 0, %s77
      %s95 = sphi 0, %s95
      %s97 = sphi 0, %s95
      %s98 = sphi 0, %s97
      %s112 = sphi 0, %s98
      %s116 = sphi 0, %s116
      %s118 = sphi 0, %s116
      %s119 = sphi 0, %s118
      %s133 = sphi 0, %s119
      %s139 = sphi 0, %s141
      %s142 = sphi 0, %s139
      %s143 = sphi 0, %s142
      %s159 = sphi 0, %s143
      %s165 = sphi 0, %s167
      %s168 = sphi 0, %s165
      %s169 = sphi 0, %s168
      %s185 = sphi 0, %s169
    $region4: #{tpu_custom_call.1} parent=1 // loop_header_branch
      %22 = sbr.rel (%p20) target = $region8
    $region5: #{tpu_custom_call.1} parent=1 // loop_body
      %s24 = ssub.s32 %s19, 1
      %s25 = ssub.s32 %s19, 2
      %s26 = sadd.s32 %s19, 1
      %s27 = ssub.s32 %s19, %s26
      %p28 = scmp.eq.s32.totalorder %s27, 0
      %s30 = sadd.s32 %s29, 1
      %s31 = scalar_select %p28, %s29, %s30
      %p34 = pneg %p28
      %p35 = scmp.eq.s32.totalorder %s19, 1
      %p36 = por %p34, %p35
      %p37 = scmp.ne.s32.totalorder %s29, %s32
      %p38 = scmp.eq.s32.totalorder %s19, 0
      %p39 = por %p37, %p38
      %p40 = scmp.ne.s32.totalorder %s29, %s32
      %p41 = scmp.eq.s32.totalorder %s24, 1
      %p42 = por %p40, %p41
      %p43 = scmp.ne.s32.totalorder %s32, %s33
      %p44 = scmp.eq.s32.totalorder %s24, 0
      %p45 = por %p43, %p44
      %p46 = scmp.ne.s32.totalorder %s32, %s33
      %p47 = scmp.eq.s32.totalorder %s25, 1
      %p48 = por %p46, %p47
      %p50 = scmp.ne.s32.totalorder %s33, %s49
      %p51 = scmp.eq.s32.totalorder %s25, 0
      %p52 = por %p50, %p51
      %s54 = sadd.s32 %s53, 1
      %p57 = scmp.eq.s32.totalorder %s19, 1
      %p58 = scmp.ne.s32.totalorder %s53, %s55
      %p59 = scmp.eq.s32.totalorder %s19, 0
      %p60 = por %p58, %p59
      %p61 = scmp.ne.s32.totalorder %s53, %s55
      %p62 = scmp.eq.s32.totalorder %s24, 1
      %p63 = por %p61, %p62
      %p64 = scmp.ne.s32.totalorder %s55, %s56
      %p65 = scmp.eq.s32.totalorder %s24, 0
      %p66 = por %p64, %p65
      %p67 = scmp.ne.s32.totalorder %s55, %s56
      %p68 = scmp.eq.s32.totalorder %s25, 1
      %p69 = por %p67, %p68
      %p71 = scmp.ne.s32.totalorder %s56, %s70
      %p72 = scmp.eq.s32.totalorder %s25, 0
      %p73 = por %p71, %p72
      %s75 = sadd.s32 %s74, 1
      %p78 = scmp.eq.s32.totalorder %s19, 1
      %p79 = scmp.ne.s32.totalorder %s74, %s76
      %p80 = scmp.eq.s32.totalorder %s19, 0
      %p81 = por %p79, %p80
      %p82 = scmp.ne.s32.totalorder %s74, %s76
      %p83 = scmp.eq.s32.totalorder %s24, 1
      %p84 = por %p82, %p83
      %p85 = scmp.ne.s32.totalorder %s76, %s77
      %p86 = scmp.eq.s32.totalorder %s24, 0
      %p87 = por %p85, %p86
      %p88 = scmp.ne.s32.totalorder %s76, %s77
      %p89 = scmp.eq.s32.totalorder %s25, 1
      %p90 = por %p88, %p89
      %p92 = scmp.ne.s32.totalorder %s77, %s91
      %p93 = scmp.eq.s32.totalorder %s25, 0
      %p94 = por %p92, %p93
      %s96 = sadd.s32 %s95, 1
      %p99 = scmp.eq.s32.totalorder %s19, 1
      %p100 = scmp.ne.s32.totalorder %s95, %s97
      %p101 = scmp.eq.s32.totalorder %s19, 0
      %p102 = por %p100, %p101
      %p103 = scmp.ne.s32.totalorder %s95, %s97
      %p104 = scmp.eq.s32.totalorder %s24, 1
      %p105 = por %p103, %p104
      %p106 = scmp.ne.s32.totalorder %s97, %s98
      %p107 = scmp.eq.s32.totalorder %s24, 0
      %p108 = por %p106, %p107
      %p109 = scmp.ne.s32.totalorder %s97, %s98
      %p110 = scmp.eq.s32.totalorder %s25, 1
      %p111 = por %p109, %p110
      %p113 = scmp.ne.s32.totalorder %s98, %s112
      %p114 = scmp.eq.s32.totalorder %s25, 0
      %p115 = por %p113, %p114
      %s117 = sadd.s32 %s116, 1
      %p120 = scmp.eq.s32.totalorder %s19, 1
      %p121 = scmp.ne.s32.totalorder %s116, %s118
      %p122 = scmp.eq.s32.totalorder %s19, 0
      %p123 = por %p121, %p122
      %p124 = scmp.ne.s32.totalorder %s116, %s118
      %p125 = scmp.eq.s32.totalorder %s24, 1
      %p126 = por %p124, %p125
      %p127 = scmp.ne.s32.totalorder %s118, %s119
      %p128 = scmp.eq.s32.totalorder %s24, 0
      %p129 = por %p127, %p128
      %p130 = scmp.ne.s32.totalorder %s118, %s119
      %p131 = scmp.eq.s32.totalorder %s25, 1
      %p132 = por %p130, %p131
      %p134 = scmp.ne.s32.totalorder %s119, %s133
      %p135 = scmp.eq.s32.totalorder %s25, 0
      %p136 = por %p134, %p135
      %s137 = ssub.s32 %s19, %s26
      %p138 = scmp.eq.s32.totalorder %s137, 0
      %s140 = sadd.s32 %s139, 1
      %s141 = scalar_select %p138, %s139, %s140
      %p144 = pneg %p138
      %p145 = scmp.eq.s32.totalorder %s19, 1
      %p146 = por %p144, %p145
      %p147 = scmp.ne.s32.totalorder %s139, %s142
      %p148 = scmp.eq.s32.totalorder %s19, 0
      %p149 = por %p147, %p148
      %p150 = scmp.ne.s32.totalorder %s139, %s142
      %p151 = scmp.eq.s32.totalorder %s24, 1
      %p152 = por %p150, %p151
      %p153 = scmp.ne.s32.totalorder %s142, %s143
      %p154 = scmp.eq.s32.totalorder %s24, 0
      %p155 = por %p153, %p154
      %p156 = scmp.ne.s32.totalorder %s142, %s143
      %p157 = scmp.eq.s32.totalorder %s25, 1
      %p158 = por %p156, %p157
      %p160 = scmp.ne.s32.totalorder %s143, %s159
      %p161 = scmp.eq.s32.totalorder %s25, 0
      %p162 = por %p160, %p161
      %s163 = ssub.s32 %s19, %s26
      %p164 = scmp.eq.s32.totalorder %s163, 0
      %s166 = sadd.s32 %s165, 1
      %s167 = scalar_select %p164, %s165, %s166
      %p170 = pneg %p164
      %p171 = scmp.eq.s32.totalorder %s19, 1
      %p172 = por %p170, %p171
      %p173 = scmp.ne.s32.totalorder %s165, %s168
      %p174 = scmp.eq.s32.totalorder %s19, 0
      %p175 = por %p173, %p174
      %p176 = scmp.ne.s32.totalorder %s165, %s168
      %p177 = scmp.eq.s32.totalorder %s24, 1
      %p178 = por %p176, %p177
      %p179 = scmp.ne.s32.totalorder %s168, %s169
      %p180 = scmp.eq.s32.totalorder %s24, 0
      %p181 = por %p179, %p180
      %p182 = scmp.ne.s32.totalorder %s168, %s169
      %p183 = scmp.eq.s32.totalorder %s25, 1
      %p184 = por %p182, %p183
      %p186 = scmp.ne.s32.totalorder %s169, %s185
      %p187 = scmp.eq.s32.totalorder %s25, 0
      %p188 = por %p186, %p187
      %p189 = scmp.le.s32.totalorder 1, %s19
      %p190 = scmp.lt.s32.totalorder %s19, 3
      %p191 = pnand %p189, %p190
      %p192 = pneg %p191
      // Predicated region
      $region9: #{tpu_custom_call.1} parent=5 // pred_check
        _
      $region10: #{tpu_custom_call.1} parent=5 // pred_check_branch
        %194 = sbr.rel (%p191) target = $region12
      $region11: #{tpu_custom_call.1} parent=5 // pred_region
        %s195 = ssub.s32 %s19, 1
        // Predicated region
        $region13: #{tpu_custom_call.1} parent=11 // pred_check
          %p196 = pneg %p66
        $region14: #{tpu_custom_call.1} parent=11 // pred_check_branch
          %198 = sbr.rel (%p196) target = $region16
        $region15: #{tpu_custom_call.1} parent=11 // pred_region
          _
        $region16: #{tpu_custom_call.1} parent=11 // pred_fallthru
          _
        // Predicated region
        $region17: #{tpu_custom_call.1} parent=11 // pred_check
          %p199 = pneg %p87
        $region18: #{tpu_custom_call.1} parent=11 // pred_check_branch
          %201 = sbr.rel (%p199) target = $region20
        $region19: #{tpu_custom_call.1} parent=11 // pred_region
          _
        $region20: #{tpu_custom_call.1} parent=11 // pred_fallthru
          _
        // Predicated region
        $region21: #{tpu_custom_call.1} parent=11 // pred_check
          %p202 = pneg %p108
        $region22: #{tpu_custom_call.1} parent=11 // pred_check_branch
          %204 = sbr.rel (%p202) target = $region24
        $region23: #{tpu_custom_call.1} parent=11 // pred_region
          _
        $region24: #{tpu_custom_call.1} parent=11 // pred_fallthru
          _
        // Predicated region
        $region25: #{tpu_custom_call.1} parent=11 // pred_check
          %p205 = pneg %p129
        $region26: #{tpu_custom_call.1} parent=11 // pred_check_branch
          %207 = sbr.rel (%p205) target = $region28
        $region27: #{tpu_custom_call.1} parent=11 // pred_region
          _
        $region28: #{tpu_custom_call.1} parent=11 // pred_fallthru
          _
      $region12: #{tpu_custom_call.1} parent=5 // pred_fallthru
        _
      %p208 = scmp.lt.s32.totalorder %s19, 2
      // Predicated region
      $region29: #{tpu_custom_call.1} parent=5 // pred_check
        %p209 = pneg %p208
      $region30: #{tpu_custom_call.1} parent=5 // pred_check_branch
        %211 = sbr.rel (%p209) target = $region32
      $region31: #{tpu_custom_call.1} parent=5 // pred_region
        // Predicated region
        $region33: #{tpu_custom_call.1} parent=31 // pred_check
          %p212 = pneg %p39
        $region34: #{tpu_custom_call.1} parent=31 // pred_check_branch
          %214 = sbr.rel (%p212) target = $region36
        $region35: #{tpu_custom_call.1} parent=31 // pred_region
          %s215 = smul.u32 2, %s19
          %p216 = scmp.lt.s32.totalorder %s215, 3
          %s217 = scalar_select %p216, %s215, 3
          %s218 = smul.addr %s217, 4
          %s219 = scalar_lea.vmem %s0, %s218
          %s220 = smul.u32 2, %s19
        $region36: #{tpu_custom_call.1} parent=31 // pred_fallthru
          _
      $region32: #{tpu_custom_call.1} parent=5 // pred_fallthru
        _
      %p221 = scmp.le.s32.totalorder 1, %s19
      %p222 = scmp.lt.s32.totalorder %s19, 3
      %p223 = pnand %p221, %p222
      %p224 = pneg %p223
      // Predicated region
      $region37: #{tpu_custom_call.1} parent=5 // pred_check
        _
      $region38: #{tpu_custom_call.1} parent=5 // pred_check_branch
        %226 = sbr.rel (%p223) target = $region40
      $region39: #{tpu_custom_call.1} parent=5 // pred_region
        %s227 = ssub.s32 %s19, 1
        %s228 = smul.u32 2, %s24
        %p229 = scmp.lt.s32.totalorder %s228, 3
        %s230 = scalar_select %p229, %s228, 3
        %s231 = smul.addr %s230, 4
        %s232 = scalar_lea.vmem %s0, %s231
        %p233 = pneg %p45
        %p234 = pneg %p42
        %p235 = pneg %p66
        %p236 = pneg %p63
        %p237 = pneg %p87
        %p238 = pneg %p84
        %p239 = pneg %p108
        %p240 = pneg %p105
        %p241 = pneg %p129
        %p242 = pneg %p126
        %p243 = pneg %p155
        %p244 = pneg %p152
        %s245 = sand.u32 %s142, 1
        %s246 = scalar_lea.sflag [#allocation3], %s245
        %s247 = sand.u32 %s142, 1
        %s248 = smul.addr %s247, 8
        %s249 = scalar_lea.vmem [#allocation2], %s248
        %p250 = pneg %p181
        %p251 = pneg %p178
        %s252 = sand.u32 %s168, 1
        %s253 = scalar_lea.sflag [#allocation5], %s252
        %s254 = sand.u32 %s168, 1
        %s255 = smul.addr %s254, 8
        %s256 = scalar_lea.vmem [#allocation4], %s255
        %s257 = smul.u32 2, %s24
        %p258 = scmp.lt.s32.totalorder %s257, 3
        %s259 = scalar_select %p258, %s257, 3
        %s260 = smul.addr %s259, 4
        %s261 = scalar_lea.vmem %s0, %s260
        %s262 = smul.u32 2, %s24
        %s263 = smul.u32 2, %s24
        %s264 = smul.u32 2, %s24
        %v266 = vld [vmem:[%s261] sm:$0xf]
        %v267 = vld [vmem:[%s261 + $0x4] sm:$0xf]
        %v268 = vld [vmem:[%s1] sm:$0xf]
        %v269 = vld [vmem:[%s1 + $0x4] sm:$0xf]
        %v270 = vld [vmem:[%s1 + $0x8] sm:$0xf]
        %v271 = vld [vmem:[%s1 + $0xc] sm:$0xf]
        %v272 = vld [vmem:[%s1 + $0x10] sm:$0xf]
        %v273 = vld [vmem:[%s1 + $0x14] sm:$0xf]
        %v274 = vld [vmem:[%s2] sm:$0x1]
        %v276 = vlaneseq
        %v277 = vshrl.u32 %v276, 7
        %v278 = vsub.s32 0, %v277
        %v279 = vrot.slane %v274, %v278
        %v283 = vunpack.c.l.b16 %v266
        %v284 = vunpack.c.l.b16 %v267
        %v285 = vpack.c.b16 %v284, %v283
        %v292 = vunpack.c.l.b16 %v268
        %v293 = vunpack.c.l.b16 %v269
        %v294 = vunpack.c.l.b16 %v270
        %v295 = vunpack.c.l.b16 %v271
        %v296 = vunpack.c.l.b16 %v272
        %v297 = vunpack.c.l.b16 %v273
        %v298 = vpack.c.b16 %v293, %v292
        %v299 = vpack.c.b16 %v295, %v294
        %v300 = vpack.c.b16 %v297, %v296
        %vm304 = vcmask 392192
        %v306 = vsel %vm304, %v285, 0
        %308 = vmatprep.subr.bf16.mxu0 0
        %309 = vmatpush1.bf16.msra.mxu0 %v298
        %310 = vmatprep.subr.bf16.mxu0 0
        %311 = vmatpush1.bf16.msra.mxu0 %v299
        %312 = vmatprep.subr.bf16.mxu0 0
        %313 = vmatpush1.bf16.msra.mxu0 %v300
        %314 = vmatprep.subr.bf16.mxu0 0
        %315 = vmatpush1.bf16.msra.mxu0 0
        %316 = vmatprep.subr.bf16.mxu0 0
        %317 = vmatpush1.bf16.msra.mxu0 0
        %318 = vmatprep.subr.bf16.mxu0 0
        %319 = vmatpush1.bf16.msra.mxu0 0
        %320 = vmatprep.subr.bf16.mxu0 0
        %321 = vmatpush1.bf16.msra.mxu0 0
        %322 = vmatprep.subr.bf16.mxu0 0
        %323 = vmatpush1.bf16.msra.mxu0 0
        %324 = vmatprep.subr.bf16.mxu0 0
        %325 = vmatpush1.bf16.msra.mxu0 0
        %326 = vmatprep.subr.bf16.mxu0 0
        %327 = vmatpush1.bf16.msra.mxu0 0
        %328 = vmatprep.subr.bf16.mxu0 0
        %329 = vmatpush1.bf16.msra.mxu0 0
        %330 = vmatprep.subr.bf16.mxu0 0
        %331 = vmatpush1.bf16.msra.mxu0 0
        %332 = vmatprep.subr.bf16.mxu0 0
        %333 = vmatpush1.bf16.msra.mxu0 0
        %334 = vmatprep.subr.bf16.mxu0 0
        %335 = vmatpush1.bf16.msra.mxu0 0
        %336 = vmatprep.subr.bf16.mxu0 0
        %337 = vmatpush1.bf16.msra.mxu0 0
        %338 = vmatprep.subr.bf16.mxu0 0
        %339 = vmatpush1.bf16.msra.mxu0 0
        %340 = vmatprep.mubr.bf16.mxu0 0
        %341 = vmatmul.mubr.bf16.gmra.mrb[0].mxu0 %v306
        %v342 = vpop.f32.mrb[0].mxu0
        %v343 = vadd.f32 %v279, %v342
        %v344 = vpop.f32.mrb[0].mxu0
        %v345 = vpop.f32.mrb[0].mxu0
        %v346 = vadd.f32 %v279, %v345
        %v347 = vpop.f32.mrb[0].mxu0
        %348 = vdwg.mxu0
        %v349 = vmax.f32 %v343, 0.0
        %v350 = vmax.f32 %v346, 0.0
        %v351 = vpack.c.bf16 %v350, %v349
        %v352 = vld [vmem:[%s3] sm:$0xff]
        %v353 = vld [vmem:[%s3 + $0x8] sm:$0xff]
        %v354 = vld [vmem:[%s4] sm:$0x3]
        %v356 = vlaneseq
        %v357 = vshrl.u32 %v356, 7
        %v358 = vsub.s32 0, %v357
        %v359 = vrot.slane %v354, %v358
        %v360 = vlaneseq
        %v361 = vshrl.u32 %v360, 7
        %v362 = vsub.s32 1, %v361
        %v363 = vrot.slane %v354, %v362
        %v368 = vunpack.c.l.b16 %v352
        %v369 = vunpack.c.h.b16 %v352
        %v370 = vunpack.c.l.b16 %v353
        %v371 = vunpack.c.h.b16 %v353
        %v372 = vpack.c.b16 %v370, %v368
        %v373 = vpack.c.b16 %v371, %v369
        %vm376 = vcmask 130048
        %v378 = vsel %vm376, %v351, 0
        %380 = vmatprep.subr.bf16.mxu0 %v373
        %381 = vmatpush1.bf16.msra.mxu0 %v372
        %382 = vmatprep.subr.bf16.mxu0 0
        %383 = vmatpush1.bf16.msra.mxu0 0
        %384 = vmatprep.subr.bf16.mxu0 0
        %385 = vmatpush1.bf16.msra.mxu0 0
        %386 = vmatprep.subr.bf16.mxu0 0
        %387 = vmatpush1.bf16.msra.mxu0 0
        %388 = vmatprep.subr.bf16.mxu0 0
        %389 = vmatpush1.bf16.msra.mxu0 0
        %390 = vmatprep.subr.bf16.mxu0 0
        %391 = vmatpush1.bf16.msra.mxu0 0
        %392 = vmatprep.subr.bf16.mxu0 0
        %393 = vmatpush1.bf16.msra.mxu0 0
        %394 = vmatprep.subr.bf16.mxu0 0
        %395 = vmatpush1.bf16.msra.mxu0 0
        %396 = vmatprep.subr.bf16.mxu0 0
        %397 = vmatpush1.bf16.msra.mxu0 0
        %398 = vmatprep.subr.bf16.mxu0 0
        %399 = vmatpush1.bf16.msra.mxu0 0
        %400 = vmatprep.subr.bf16.mxu0 0
        %401 = vmatpush1.bf16.msra.mxu0 0
        %402 = vmatprep.subr.bf16.mxu0 0
        %403 = vmatpush1.bf16.msra.mxu0 0
        %404 = vmatprep.subr.bf16.mxu0 0
        %405 = vmatpush1.bf16.msra.mxu0 0
        %406 = vmatprep.subr.bf16.mxu0 0
        %407 = vmatpush1.bf16.msra.mxu0 0
        %408 = vmatprep.subr.bf16.mxu0 0
        %409 = vmatpush1.bf16.msra.mxu0 0
        %410 = vmatprep.subr.bf16.mxu0 0
        %411 = vmatpush1.bf16.msra.mxu0 0
        %412 = vmatprep.mubr.bf16.mxu0 0
        %413 = vmatmul.mubr.bf16.gmra.mrb[0].mxu0 %v378
        %v414 = vpop.f32.mrb[0].mxu0
        %v415 = vadd.f32 %v359, %v414
        %v416 = vpop.f32.mrb[0].mxu0
        %v417 = vadd.f32 %v363, %v416
        %v418 = vpop.f32.mrb[0].mxu0
        %v419 = vadd.f32 %v359, %v418
        %v420 = vpop.f32.mrb[0].mxu0
        %v421 = vadd.f32 %v363, %v420
        %422 = vdwg.mxu0
        %v423 = vpack.c.bf16 %v419, %v415
        %v425 = vunpack.c.l.b16 %v423
        %v426 = vunpack.c.h.b16 %v423
        %v427 = vpack.c.b16 %v425, %v425
        %v428 = vpack.c.b16 %v426, %v426
        %431 = vst [vmem:[%s249] sm:$0xf] %v427
        %432 = vst [vmem:[%s249 + $0x4] sm:$0xf] %v428
        %v433 = vpack.c.bf16 %v421, %v417
        %v435 = vunpack.c.l.b16 %v433
        %v436 = vunpack.c.h.b16 %v433
        %v437 = vpack.c.b16 %v435, %v435
        %v438 = vpack.c.b16 %v436, %v436
        %441 = vst [vmem:[%s256] sm:$0xf] %v437
        %442 = vst [vmem:[%s256 + $0x4] sm:$0xf] %v438
        %s443 = sand.u32 %s142, 1
        %s444 = scalar_lea.sflag [#allocation3], %s443
        %s445 = sand.u32 %s142, 1
        %s446 = smul.addr %s445, 8
        %s447 = scalar_lea.vmem [#allocation2], %s446
        %s448 = sand.u32 %s168, 1
        %s449 = scalar_lea.sflag [#allocation5], %s448
        %s450 = sand.u32 %s168, 1
        %s451 = smul.addr %s450, 8
        %s452 = scalar_lea.vmem [#allocation4], %s451
        // Predicated region
        $region41: #{tpu_custom_call.1} parent=39 // pred_check
          %p453 = pneg %p152
        $region42: #{tpu_custom_call.1} parent=39 // pred_check_branch
          %455 = sbr.rel (%p453) target = $region44
        $region43: #{tpu_custom_call.1} parent=39 // pred_region
          %s456 = smul.u32 2, %s24
          %s458 = ssub.s32 128, 128
          %459 = vsyncadd %s444, %s458
          %s460 = smul.addr %s456, 64
          %s461 = scalar_lea.hbm %s5, %s460
          %s462 = sshll.u32 %s447, 4
          %s463 = int_to_ptr.vmem [resolvable:$true] %s462
          %468 = dma.vmem_to_hbm [thread:$0]  %s463, 128, %s461, %s444, 64, 64, 4
        $region44: #{tpu_custom_call.1} parent=39 // pred_fallthru
          _
        // Predicated region
        $region45: #{tpu_custom_call.1} parent=39 // pred_check
          %p469 = pneg %p178
        $region46: #{tpu_custom_call.1} parent=39 // pred_check_branch
          %471 = sbr.rel (%p469) target = $region48
        $region47: #{tpu_custom_call.1} parent=39 // pred_region
          %s472 = smul.u32 2, %s24
          %s474 = ssub.s32 128, 128
          %475 = vsyncadd %s449, %s474
          %s476 = smul.addr %s472, 64
          %s477 = scalar_lea.hbm %s6, %s476
          %s478 = sshll.u32 %s452, 4
          %s479 = int_to_ptr.vmem [resolvable:$true] %s478
          %484 = dma.vmem_to_hbm [thread:$0]  %s479, 128, %s477, %s449, 64, 64, 4
        $region48: #{tpu_custom_call.1} parent=39 // pred_fallthru
          _
      $region40: #{tpu_custom_call.1} parent=5 // pred_fallthru
        _
      %p485 = scmp.le.s32.totalorder 2, %s19
      // Predicated region
      $region49: #{tpu_custom_call.1} parent=5 // pred_check
        %p486 = pneg %p485
      $region50: #{tpu_custom_call.1} parent=5 // pred_check_branch
        %488 = sbr.rel (%p486) target = $region52
      $region51: #{tpu_custom_call.1} parent=5 // pred_region
        %s489 = ssub.s32 %s19, 2
        // Predicated region
        $region53: #{tpu_custom_call.1} parent=51 // pred_check
          %p490 = pneg %p158
        $region54: #{tpu_custom_call.1} parent=51 // pred_check_branch
          %492 = sbr.rel (%p490) target = $region56
        $region55: #{tpu_custom_call.1} parent=51 // pred_region
          %s493 = sand.u32 %s143, 1
          %s494 = scalar_lea.sflag [#allocation3], %s493
          %s495 = sand.u32 %s143, 1
          %s496 = smul.addr %s495, 8
          %s497 = scalar_lea.vmem [#allocation2], %s496
          %498 = dma.done %s494, 128
        $region56: #{tpu_custom_call.1} parent=51 // pred_fallthru
          _
        // Predicated region
        $region57: #{tpu_custom_call.1} parent=51 // pred_check
          %p499 = pneg %p184
        $region58: #{tpu_custom_call.1} parent=51 // pred_check_branch
          %501 = sbr.rel (%p499) target = $region60
        $region59: #{tpu_custom_call.1} parent=51 // pred_region
          %s502 = sand.u32 %s169, 1
          %s503 = scalar_lea.sflag [#allocation5], %s502
          %s504 = sand.u32 %s169, 1
          %s505 = smul.addr %s504, 8
          %s506 = scalar_lea.vmem [#allocation4], %s505
          %507 = dma.done %s503, 128
        $region60: #{tpu_custom_call.1} parent=51 // pred_fallthru
          _
      $region52: #{tpu_custom_call.1} parent=5 // pred_fallthru
        _
    $region6: #{tpu_custom_call.1} parent=1 // loop_footer
      %s23 = sadd.s32 1, %s19
    $region7: #{tpu_custom_call.1} parent=1 // loop_footer_branch
      %18 = sbr.rel target = $region3
    $region8: #{tpu_custom_call.1} parent=1 // loop_exit
      _
    %508 = vsyncpa [#allocation3], 1
    %s509 = scalar_lea.sflag [#allocation3], 1
    %510 = vsyncpa %s509, 1
    %511 = vsyncpa [#allocation5], 1
    %s512 = scalar_lea.sflag [#allocation5], 1
    %513 = vsyncpa %s512, 1

</llo_original>
